<compile_context>
chip_gen: v5e
topology: v5e:2x2
jax: 0.10.0
libtpu: 0.0.40
codegen_flags: <defaults>
</compile_context>

<pallas_src>
import functools

import jax
import jax.numpy as jnp
from jax.experimental import pallas as pl
from jax.experimental.pallas import tpu as pltpu

ALPHA = 0.01          # LeakyReLU negative_slope
N_CLASSES = 10
OUT_PAD = 128         # lane-dense padded output width
NEG_INF = -1e30       # bias value for padded (fake) classes


def _leaky_relu(x, alpha):
    return jnp.where(x > 0, x, alpha * x)


def _round_up(n, m):
    return ((n + m - 1) // m) * m


def mnist_nn_kernel(x_ref, w1_ref, b1_ref, w2_ref, b2_ref, w3_ref, b3_ref,
                    out_ref):
    # x tile: (TB, 784) f32 (native dtype, no wrapper HBM round-trip).
    # Cast to bf16 in-kernel (VPU work, hidden under the HBM-bound DMA).
    x = x_ref[...].astype(jnp.bfloat16)

    # fc1 + LeakyReLU (MXU bf16 x bf16 -> f32 accumulate)
    h1 = jnp.dot(x, w1_ref[...], preferred_element_type=jnp.float32)
    h1 = _leaky_relu(h1 + b1_ref[...], ALPHA)

    # dropout(p=0.0) is identity — nothing to do.

    # fc2 + LeakyReLU
    h2 = jnp.dot(h1.astype(jnp.bfloat16), w2_ref[...],
                 preferred_element_type=jnp.float32)
    h2 = _leaky_relu(h2 + b2_ref[...], ALPHA)

    # output layer (padded to 128 lane-dense columns; padded bias = -1e30)
    logits = jnp.dot(h2.astype(jnp.bfloat16), w3_ref[...],
                     preferred_element_type=jnp.float32)
    logits = logits + b3_ref[...]

    # log_softmax along the class axis; padded columns contribute exp(-inf)=0.
    m = jnp.max(logits, axis=-1, keepdims=True)
    shifted = logits - m
    lse = jnp.log(jnp.sum(jnp.exp(shifted), axis=-1, keepdims=True))
    out_ref[...] = (shifted - lse).astype(out_ref.dtype)


@functools.partial(
    jax.jit, static_argnames=("block_rows", "return_padded", "out_dtype"))
def mnist_nn_forward(x, params, *, block_rows=2048, return_padded=False,
                     out_dtype=jnp.bfloat16):
    """x: (B, 784) float. params: dict of w1,b1,w2,b2,w3,b3 (w as (in, out)).

    Returns (B, 10) log-probs, or the padded (B_pad, 128) slab if
    return_padded=True (documented layout: real classes in [:, :10],
    real rows in [:B, :]).
    """
    B, D = x.shape
    x = x.astype(jnp.float32)   # native dtype in; bf16 cast happens in-kernel

    # --- weight prep (bf16 matmul operands, f32 biases, lane-dense output) ---
    w1 = params["w1"].astype(jnp.bfloat16)
    b1 = params["b1"].reshape(1, -1).astype(jnp.float32)
    w2 = params["w2"].astype(jnp.bfloat16)
    b2 = params["b2"].reshape(1, -1).astype(jnp.float32)

    w3 = params["w3"]
    b3 = params["b3"].reshape(-1)
    h2_dim, n_cls = w3.shape
    w3p = jnp.zeros((h2_dim, OUT_PAD), jnp.float32).at[:, :n_cls].set(
        w3.astype(jnp.float32)).astype(jnp.bfloat16)
    b3p = jnp.full((1, OUT_PAD), NEG_INF, jnp.float32).at[:, :n_cls].set(
        b3.astype(jnp.float32))

    # --- batch tiling: TB always a multiple of 16 and a divisor of B_pad ---
    br = max(16, (int(block_rows) // 16) * 16)
    B16 = _round_up(B, 16)
    TB = min(br, B16)
    if TB == B16 and B16 >= 32:
        # Would be a 1-step grid: split into >=2 steps so "parallel" can
        # shard the batch across both v7x TensorCores (pads < 32 rows).
        TB = _round_up((B16 + 1) // 2, 16)
    B_pad = _round_up(B, TB)
    if B_pad != B:
        x = jnp.pad(x, ((0, B_pad - B), (0, 0)))

    h1_dim = w1.shape[1]
    flops = 2 * B_pad * (D * h1_dim + h1_dim * h2_dim + h2_dim * OUT_PAD)
    bytes_accessed = (x.size * 4
                      + (w1.size + w2.size + w3p.size) * 2
                      + (b1.size + b2.size + b3p.size) * 4
                      + B_pad * OUT_PAD * jnp.dtype(out_dtype).itemsize)

    out = pl.pallas_call(
        mnist_nn_kernel,
        out_shape=jax.ShapeDtypeStruct((B_pad, OUT_PAD), out_dtype),
        grid=(B_pad // TB,),
        in_specs=[
            pl.BlockSpec((TB, D), lambda i: (i, 0)),          # x: tiled on batch
            pl.BlockSpec(w1.shape, lambda i: (0, 0)),          # weights resident
            pl.BlockSpec(b1.shape, lambda i: (0, 0)),
            pl.BlockSpec(w2.shape, lambda i: (0, 0)),
            pl.BlockSpec(b2.shape, lambda i: (0, 0)),
            pl.BlockSpec(w3p.shape, lambda i: (0, 0)),
            pl.BlockSpec(b3p.shape, lambda i: (0, 0)),
        ],
        out_specs=pl.BlockSpec((TB, OUT_PAD), lambda i: (i, 0)),
        compiler_params=pltpu.CompilerParams(
            dimension_semantics=("parallel",),
            vmem_limit_bytes=32 * 1024 * 1024),   # covers TB=2048 on v5e too
        cost_estimate=pl.CostEstimate(
            flops=flops,
            transcendentals=B_pad * OUT_PAD,
            bytes_accessed=bytes_accessed),
    )(x, w1, b1, w2, b2, w3p, b3p)

    if return_padded:
        # Perf path: let a fused consumer slice [:B, :N_CLASSES] lazily
        # instead of paying a separate HBM pass here.
        return out
    return out[:B, :n_cls]


def init_params(key):
    """Deterministic init matching nn.Linear shapes (stored transposed)."""
    ks = jax.random.split(key, 6)

    def lin(kw, kb, fan_in, fan_out):
        bound = 1.0 / jnp.sqrt(fan_in)
        w = jax.random.uniform(kw, (fan_in, fan_out), jnp.float32, -bound, bound)
        b = jax.random.uniform(kb, (1, fan_out), jnp.float32, -bound, bound)
        return w, b

    w1, b1 = lin(ks[0], ks[1], 784, 128)
    w2, b2 = lin(ks[2], ks[3], 128, 64)
    w3, b3 = lin(ks[4], ks[5], 64, 10)
    return {"w1": w1, "b1": b1, "w2": w2, "b2": b2, "w3": w3, "b3": b3}


def reference_forward(x, p):
    """Pure-JAX f32 reference with the exact module semantics."""
    h1 = _leaky_relu(x @ p["w1"] + p["b1"].reshape(1, -1), ALPHA)
    h2 = _leaky_relu(h1 @ p["w2"] + p["b2"].reshape(1, -1), ALPHA)
    logits = h2 @ p["w3"] + p["b3"].reshape(1, -1)
    return jax.nn.log_softmax(logits, axis=1)


if __name__ == "__main__":
    key = jax.random.PRNGKey(0)
    k_x, k_p = jax.random.split(key)
    params = init_params(k_p)

    # Case 1: tiny batch (single grid step, B_pad=16).
    B = 8
    x = jax.random.normal(k_x, (B, 784), jnp.float32)
    out = jax.block_until_ready(mnist_nn_forward(x, params))
    ref = reference_forward(x, params)
    assert out.shape == (B, N_CLASSES)
    # bf16 matmul operands + bf16 output -> compare to f32 reference with
    # bf16-level tolerance.
    assert jnp.max(jnp.abs(out.astype(jnp.float32) - ref)) < 5e-2, \
        "mismatch vs reference (B=8)"
    # log_softmax rows must exponentiate-sum to 1 (bf16-level tolerance).
    assert jnp.allclose(jnp.sum(jnp.exp(out.astype(jnp.float32)), axis=1),
                        1.0, atol=2e-2)

    # Case 2: batch not divisible by the tile -> padding + multi-step grid
    # (B=40, block_rows=16 -> TB=16, B_pad=48, 3 grid steps).
    B2 = 40
    x2 = jax.random.normal(jax.random.PRNGKey(1), (B2, 784), jnp.float32)
    out2 = jax.block_until_ready(mnist_nn_forward(x2, params, block_rows=16))
    ref2 = reference_forward(x2, params)
    assert out2.shape == (B2, N_CLASSES)
    assert jnp.max(jnp.abs(out2.astype(jnp.float32) - ref2)) < 5e-2, \
        "mismatch vs reference (B=40)"

    # Case 3: default block_rows with return_padded -> single-step grid split
    # into 2 steps (TB=32, B_pad=64), lane-dense padded slab returned.
    out3 = jax.block_until_ready(
        mnist_nn_forward(x2, params, return_padded=True))
    assert out3.shape[1] == OUT_PAD and out3.shape[0] % 16 == 0
    assert jnp.max(jnp.abs(out3[:B2, :N_CLASSES].astype(jnp.float32) - ref2)) \
        < 5e-2, "mismatch vs reference (padded path)"

    print("KERNEL_OK")
</pallas_src>

<mosaic_0001>
module attributes {stable_mosaic.version = 11 : i64} {
  func.func @mnist_nn_kernel(%arg0: i32, %arg1: memref<16x784xf32, #tpu.memory_space<vmem>>, %arg2: memref<784x128xbf16, #tpu.memory_space<vmem>>, %arg3: memref<1x128xf32, #tpu.memory_space<vmem>>, %arg4: memref<128x64xbf16, #tpu.memory_space<vmem>>, %arg5: memref<1x64xf32, #tpu.memory_space<vmem>>, %arg6: memref<64x128xbf16, #tpu.memory_space<vmem>>, %arg7: memref<1x128xf32, #tpu.memory_space<vmem>>, %arg8: memref<16x128xbf16, #tpu.memory_space<vmem>>) attributes {dimension_semantics = [#tpu.dimension_semantics<parallel>], iteration_bounds = array<i64: 1>, scalar_prefetch = 0 : i64, scratch_operands = 0 : i64, tpu.core_type = #tpu.core_type<tc>, window_params = [{transform_indices = @transform_0, window_bounds = array<i64: 16, 784>}, {pipeline_mode = #tpu.pipeline_mode<synchronous>, transform_indices = @transform_1, window_bounds = array<i64: 784, 128>}, {pipeline_mode = #tpu.pipeline_mode<synchronous>, transform_indices = @transform_2, window_bounds = array<i64: 1, 128>}, {pipeline_mode = #tpu.pipeline_mode<synchronous>, transform_indices = @transform_3, window_bounds = array<i64: 128, 64>}, {pipeline_mode = #tpu.pipeline_mode<synchronous>, transform_indices = @transform_4, window_bounds = array<i64: 1, 64>}, {pipeline_mode = #tpu.pipeline_mode<synchronous>, transform_indices = @transform_5, window_bounds = array<i64: 64, 128>}, {pipeline_mode = #tpu.pipeline_mode<synchronous>, transform_indices = @transform_6, window_bounds = array<i64: 1, 128>}, {transform_indices = @transform_7, window_bounds = array<i64: 16, 128>}]} {
    %c0 = arith.constant 0 : index
    %c0_0 = arith.constant 0 : index
    %0 = vector.load %arg1[%c0, %c0_0] : memref<16x784xf32, #tpu.memory_space<vmem>>, vector<16x784xf32>
    %1 = arith.truncf %0 : vector<16x784xf32> to vector<16x784xbf16>
    %c0_1 = arith.constant 0 : index
    %c0_2 = arith.constant 0 : index
    %2 = vector.load %arg2[%c0_1, %c0_2] : memref<784x128xbf16, #tpu.memory_space<vmem>>, vector<784x128xbf16>
    %cst = arith.constant dense<0.000000e+00> : vector<16x128xf32>
    %3 = tpu.matmul %1, %2, %cst {dimension_numbers = #tpu.dot_dimension_numbers<[1], [0], [0], [1], [0, 0, 1, 1], [], []>} : vector<16x784xbf16>, vector<784x128xbf16>, vector<16x128xf32> -> vector<16x128xf32>
    %c0_3 = arith.constant 0 : index
    %c0_4 = arith.constant 0 : index
    %4 = vector.load %arg3[%c0_3, %c0_4] : memref<1x128xf32, #tpu.memory_space<vmem>>, vector<1x128xf32>
    %5 = vector.broadcast %4 : vector<1x128xf32> to vector<16x128xf32>
    %6 = arith.addf %3, %5 : vector<16x128xf32>
    %cst_5 = arith.constant 0.000000e+00 : f32
    %7 = vector.broadcast %cst_5 : f32 to vector<16x128xf32>
    %8 = arith.cmpf ogt, %6, %7 : vector<16x128xf32>
    %cst_6 = arith.constant 0.00999999977 : f32
    %9 = vector.broadcast %cst_6 : f32 to vector<16x128xf32>
    %10 = arith.mulf %9, %6 : vector<16x128xf32>
    %11 = arith.select %8, %6, %10 : vector<16x128xi1>, vector<16x128xf32>
    %12 = arith.truncf %11 : vector<16x128xf32> to vector<16x128xbf16>
    %c0_7 = arith.constant 0 : index
    %c0_8 = arith.constant 0 : index
    %13 = vector.load %arg4[%c0_7, %c0_8] : memref<128x64xbf16, #tpu.memory_space<vmem>>, vector<128x64xbf16>
    %cst_9 = arith.constant dense<0.000000e+00> : vector<16x64xf32>
    %14 = tpu.matmul %12, %13, %cst_9 {dimension_numbers = #tpu.dot_dimension_numbers<[1], [0], [0], [1], [0, 0, 1, 1], [], []>} : vector<16x128xbf16>, vector<128x64xbf16>, vector<16x64xf32> -> vector<16x64xf32>
    %c0_10 = arith.constant 0 : index
    %c0_11 = arith.constant 0 : index
    %15 = vector.load %arg5[%c0_10, %c0_11] : memref<1x64xf32, #tpu.memory_space<vmem>>, vector<1x64xf32>
    %16 = vector.broadcast %15 : vector<1x64xf32> to vector<16x64xf32>
    %17 = arith.addf %14, %16 : vector<16x64xf32>
    %cst_12 = arith.constant 0.000000e+00 : f32
    %18 = vector.broadcast %cst_12 : f32 to vector<16x64xf32>
    %19 = arith.cmpf ogt, %17, %18 : vector<16x64xf32>
    %cst_13 = arith.constant 0.00999999977 : f32
    %20 = vector.broadcast %cst_13 : f32 to vector<16x64xf32>
    %21 = arith.mulf %20, %17 : vector<16x64xf32>
    %22 = arith.select %19, %17, %21 : vector<16x64xi1>, vector<16x64xf32>
    %23 = arith.truncf %22 : vector<16x64xf32> to vector<16x64xbf16>
    %c0_14 = arith.constant 0 : index
    %c0_15 = arith.constant 0 : index
    %24 = vector.load %arg6[%c0_14, %c0_15] : memref<64x128xbf16, #tpu.memory_space<vmem>>, vector<64x128xbf16>
    %cst_16 = arith.constant dense<0.000000e+00> : vector<16x128xf32>
    %25 = tpu.matmul %23, %24, %cst_16 {dimension_numbers = #tpu.dot_dimension_numbers<[1], [0], [0], [1], [0, 0, 1, 1], [], []>} : vector<16x64xbf16>, vector<64x128xbf16>, vector<16x128xf32> -> vector<16x128xf32>
    %c0_17 = arith.constant 0 : index
    %c0_18 = arith.constant 0 : index
    %26 = vector.load %arg7[%c0_17, %c0_18] : memref<1x128xf32, #tpu.memory_space<vmem>>, vector<1x128xf32>
    %27 = vector.broadcast %26 : vector<1x128xf32> to vector<16x128xf32>
    %28 = arith.addf %25, %27 : vector<16x128xf32>
    %cst_19 = arith.constant dense<0xFF800000> : vector<16xf32>
    %29 = vector.multi_reduction <maximumf>, %28, %cst_19 [1] : vector<16x128xf32> to vector<16xf32>
    %30 = vector.shape_cast %29 : vector<16xf32> to vector<16x1xf32>
    %31 = vector.broadcast %30 : vector<16x1xf32> to vector<16x128xf32>
    %32 = arith.subf %28, %31 : vector<16x128xf32>
    %33 = math.exp %32 : vector<16x128xf32>
    %cst_20 = arith.constant dense<0.000000e+00> : vector<16xf32>
    %34 = vector.multi_reduction <add>, %33, %cst_20 [1] : vector<16x128xf32> to vector<16xf32>
    %35 = vector.shape_cast %34 : vector<16xf32> to vector<16x1xf32>
    %36 = math.log %35 : vector<16x1xf32>
    %37 = vector.broadcast %36 : vector<16x1xf32> to vector<16x128xf32>
    %38 = arith.subf %32, %37 : vector<16x128xf32>
    %39 = arith.truncf %38 : vector<16x128xf32> to vector<16x128xbf16>
    %c0_21 = arith.constant 0 : index
    %c0_22 = arith.constant 0 : index
    %40 = vector.load %arg8[%c0_21, %c0_22] : memref<16x128xbf16, #tpu.memory_space<vmem>>, vector<16x128xbf16>
    tpu.vector_store %arg8[%c0_21, %c0_22], %39 {strides = array<i32>} : memref<16x128xbf16, #tpu.memory_space<vmem>>, vector<16x128xbf16>,
    return
  }
  func.func @transform_0(%arg0: i32) -> (i32, i32) {
    %c0_i32 = arith.constant 0 : i32
    %c0_i32_0 = arith.constant 0 : i32
    return %arg0, %c0_i32 : i32, i32
  }
  func.func @transform_1(%arg0: i32) -> (i32, i32) {
    %c0_i32 = arith.constant 0 : i32
    %c0_i32_0 = arith.constant 0 : i32
    %c0_i32_1 = arith.constant 0 : i32
    return %c0_i32, %c0_i32_0 : i32, i32
  }
  func.func @transform_2(%arg0: i32) -> (i32, i32) {
    %c0_i32 = arith.constant 0 : i32
    %c0_i32_0 = arith.constant 0 : i32
    %c0_i32_1 = arith.constant 0 : i32
    return %c0_i32, %c0_i32_0 : i32, i32
  }
  func.func @transform_3(%arg0: i32) -> (i32, i32) {
    %c0_i32 = arith.constant 0 : i32
    %c0_i32_0 = arith.constant 0 : i32
    %c0_i32_1 = arith.constant 0 : i32
    return %c0_i32, %c0_i32_0 : i32, i32
  }
  func.func @transform_4(%arg0: i32) -> (i32, i32) {
    %c0_i32 = arith.constant 0 : i32
    %c0_i32_0 = arith.constant 0 : i32
    %c0_i32_1 = arith.constant 0 : i32
    return %c0_i32, %c0_i32_0 : i32, i32
  }
  func.func @transform_5(%arg0: i32) -> (i32, i32) {
    %c0_i32 = arith.constant 0 : i32
    %c0_i32_0 = arith.constant 0 : i32
    %c0_i32_1 = arith.constant 0 : i32
    return %c0_i32, %c0_i32_0 : i32, i32
  }
  func.func @transform_6(%arg0: i32) -> (i32, i32) {
    %c0_i32 = arith.constant 0 : i32
    %c0_i32_0 = arith.constant 0 : i32
    %c0_i32_1 = arith.constant 0 : i32
    return %c0_i32, %c0_i32_0 : i32, i32
  }
  func.func @transform_7(%arg0: i32) -> (i32, i32) {
    %c0_i32 = arith.constant 0 : i32
    %c0_i32_0 = arith.constant 0 : i32
    return %arg0, %c0_i32 : i32, i32
  }
}

</mosaic_0001>

<llo_original>
// kernel: mnist_nn_forward.1
$region0: #{mnist_nn_forward.1}
  #allocation0 [shape = 'u32[]', space=smem, size = 0x4, offset = 0x4, fixed_abs, tag = 'smem constant byte address 0x4 - core index']
  #allocation1 [shape = 'u32[72,128]{1,0:T(1,128)}', space=vmem, size = 0x9000, scoped, tag = 'internal scratch']
  %s0 = inlined_call_operand.vmem [shape: f32[16,784], index: 0, kind: input, shape index: {}]
  %s1 = inlined_call_operand.vmem [shape: bf16[784,128], index: 1, kind: input, shape index: {}]
  %s2 = inlined_call_operand.vmem [shape: f32[1,128], index: 2, kind: input, shape index: {}]
  %s3 = inlined_call_operand.vmem [shape: bf16[128,64], index: 3, kind: input, shape index: {}]
  %s4 = inlined_call_operand.vmem [shape: f32[1,64], index: 4, kind: input, shape index: {}]
  %s5 = inlined_call_operand.vmem [shape: bf16[64,128], index: 5, kind: input, shape index: {}]
  %s6 = inlined_call_operand.vmem [shape: f32[1,128], index: 6, kind: input, shape index: {}]
  %s7 = inlined_call_operand.vmem [shape: bf16[16,128], index: 7, kind: output, shape index: {}]
  %s8 = sld [smem:[#allocation0]]
  $region38: #{mnist_nn_forward.1} parent=0
    _
  %s10 = ssub.s32 1, %s8
  %s11 = scalar_select 0, %s10, %s8
  // Predicated region
  $region2: #{mnist_nn_forward.1} parent=0 // pred_check
    _
  $region3: #{mnist_nn_forward.1} parent=0 // pred_check_branch
    %13 = sbr.rel (0) target = $region5
  $region4: #{mnist_nn_forward.1} parent=0 // pred_region
    _
  $region5: #{mnist_nn_forward.1} parent=0 // pred_fallthru
    _
  // Predicated region
  $region6: #{mnist_nn_forward.1} parent=0 // pred_check
    _
  $region7: #{mnist_nn_forward.1} parent=0 // pred_check_branch
    %15 = sbr.rel (0) target = $region9
  $region8: #{mnist_nn_forward.1} parent=0 // pred_region
    _
  $region9: #{mnist_nn_forward.1} parent=0 // pred_fallthru
    _
  // Predicated region
  $region10: #{mnist_nn_forward.1} parent=0 // pred_check
    _
  $region11: #{mnist_nn_forward.1} parent=0 // pred_check_branch
    %17 = sbr.rel (0) target = $region13
  $region12: #{mnist_nn_forward.1} parent=0 // pred_region
    _
  $region13: #{mnist_nn_forward.1} parent=0 // pred_fallthru
    _
  // Predicated region
  $region14: #{mnist_nn_forward.1} parent=0 // pred_check
    _
  $region15: #{mnist_nn_forward.1} parent=0 // pred_check_branch
    %19 = sbr.rel (0) target = $region17
  $region16: #{mnist_nn_forward.1} parent=0 // pred_region
    _
  $region17: #{mnist_nn_forward.1} parent=0 // pred_fallthru
    _
  // Predicated region
  $region18: #{mnist_nn_forward.1} parent=0 // pred_check
    _
  $region19: #{mnist_nn_forward.1} parent=0 // pred_check_branch
    %21 = sbr.rel (0) target = $region21
  $region20: #{mnist_nn_forward.1} parent=0 // pred_region
    _
  $region21: #{mnist_nn_forward.1} parent=0 // pred_fallthru
    _
  // Predicated region
  $region22: #{mnist_nn_forward.1} parent=0 // pred_check
    _
  $region23: #{mnist_nn_forward.1} parent=0 // pred_check_branch
    %23 = sbr.rel (0) target = $region25
  $region24: #{mnist_nn_forward.1} parent=0 // pred_region
    _
  $region25: #{mnist_nn_forward.1} parent=0 // pred_fallthru
    _
  // Predicated region
  $region26: #{mnist_nn_forward.1} parent=0 // pred_check
    _
  $region27: #{mnist_nn_forward.1} parent=0 // pred_check_branch
    %25 = sbr.rel (0) target = $region29
  $region28: #{mnist_nn_forward.1} parent=0 // pred_region
    _
  $region29: #{mnist_nn_forward.1} parent=0 // pred_fallthru
    _
  %v27 = vld [vmem:[%s0] sm:$0xff]
  %v28 = vld [vmem:[%s0 + $0x8] sm:$0xff]
  %v29 = vld [vmem:[%s0 + $0x10] sm:$0xff]
  %v30 = vld [vmem:[%s0 + $0x18] sm:$0xff]
  %v31 = vld [vmem:[%s0 + $0x20] sm:$0xff]
  %v32 = vld [vmem:[%s0 + $0x28] sm:$0xff]
  %v33 = vld [vmem:[%s0 + $0x30] sm:$0xff]
  %v34 = vld [vmem:[%s0 + $0x38] sm:$0xff]
  %v35 = vld [vmem:[%s0 + $0x40] sm:$0xff]
  %v36 = vld [vmem:[%s0 + $0x48] sm:$0xff]
  %v37 = vld [vmem:[%s0 + $0x50] sm:$0xff]
  %v38 = vld [vmem:[%s0 + $0x58] sm:$0xff]
  %v39 = vld [vmem:[%s0 + $0x60] sm:$0xff]
  %v40 = vld [vmem:[%s0 + $0x68] sm:$0xff]
  %v41 = vpack.c.bf16 %v34, %v27
  %v42 = vpack.c.bf16 %v35, %v28
  %v43 = vpack.c.bf16 %v36, %v29
  %v44 = vpack.c.bf16 %v37, %v30
  %v45 = vpack.c.bf16 %v38, %v31
  %v46 = vpack.c.bf16 %v39, %v32
  %v47 = vpack.c.bf16 %v40, %v33
  %v48 = vld [vmem:[%s1] sm:$0xf]
  %v49 = vld [vmem:[%s1 + $0x4] sm:$0xf]
  %v50 = vld [vmem:[%s1 + $0x8] sm:$0xf]
  %v51 = vld [vmem:[%s1 + $0xc] sm:$0xf]
  %v52 = vld [vmem:[%s1 + $0x10] sm:$0xf]
  %v53 = vld [vmem:[%s1 + $0x14] sm:$0xf]
  %v54 = vld [vmem:[%s1 + $0x18] sm:$0xf]
  %v55 = vld [vmem:[%s1 + $0x1c] sm:$0xf]
  %v56 = vld [vmem:[%s1 + $0x20] sm:$0xf]
  %v57 = vld [vmem:[%s1 + $0x24] sm:$0xf]
  %v58 = vld [vmem:[%s1 + $0x28] sm:$0xf]
  %v59 = vld [vmem:[%s1 + $0x2c] sm:$0xf]
  %v60 = vld [vmem:[%s1 + $0x30] sm:$0xf]
  %v61 = vld [vmem:[%s1 + $0x34] sm:$0xf]
  %v62 = vld [vmem:[%s1 + $0x38] sm:$0xf]
  %v63 = vld [vmem:[%s1 + $0x3c] sm:$0xf]
  %v64 = vld [vmem:[%s1 + $0x40] sm:$0xf]
  %v65 = vld [vmem:[%s1 + $0x44] sm:$0xf]
  %v66 = vld [vmem:[%s1 + $0x48] sm:$0xf]
  %v67 = vld [vmem:[%s1 + $0x4c] sm:$0xf]
  %v68 = vld [vmem:[%s1 + $0x50] sm:$0xf]
  %v69 = vld [vmem:[%s1 + $0x54] sm:$0xf]
  %v70 = vld [vmem:[%s1 + $0x58] sm:$0xf]
  %v71 = vld [vmem:[%s1 + $0x5c] sm:$0xf]
  %v72 = vld [vmem:[%s1 + $0x60] sm:$0xf]
  %v73 = vld [vmem:[%s1 + $0x64] sm:$0xf]
  %v74 = vld [vmem:[%s1 + $0x68] sm:$0xf]
  %v75 = vld [vmem:[%s1 + $0x6c] sm:$0xf]
  %v76 = vld [vmem:[%s1 + $0x70] sm:$0xf]
  %v77 = vld [vmem:[%s1 + $0x74] sm:$0xf]
  %v78 = vld [vmem:[%s1 + $0x78] sm:$0xf]
  %v79 = vld [vmem:[%s1 + $0x7c] sm:$0xf]
  %v80 = vld [vmem:[%s1 + $0x80] sm:$0xf]
  %v81 = vld [vmem:[%s1 + $0x84] sm:$0xf]
  %v82 = vld [vmem:[%s1 + $0x88] sm:$0xf]
  %v83 = vld [vmem:[%s1 + $0x8c] sm:$0xf]
  %v84 = vld [vmem:[%s1 + $0x90] sm:$0xf]
  %v85 = vld [vmem:[%s1 + $0x94] sm:$0xf]
  %v86 = vld [vmem:[%s1 + $0x98] sm:$0xf]
  %v87 = vld [vmem:[%s1 + $0x9c] sm:$0xf]
  %v88 = vld [vmem:[%s1 + $0xa0] sm:$0xf]
  %v89 = vld [vmem:[%s1 + $0xa4] sm:$0xf]
  %v90 = vld [vmem:[%s1 + $0xa8] sm:$0xf]
  %v91 = vld [vmem:[%s1 + $0xac] sm:$0xf]
  %v92 = vld [vmem:[%s1 + $0xb0] sm:$0xf]
  %v93 = vld [vmem:[%s1 + $0xb4] sm:$0xf]
  %v94 = vld [vmem:[%s1 + $0xb8] sm:$0xf]
  %v95 = vld [vmem:[%s1 + $0xbc] sm:$0xf]
  %v96 = vld [vmem:[%s1 + $0xc0] sm:$0xf]
  %v97 = vld [vmem:[%s1 + $0xc4] sm:$0xf]
  %v98 = vld [vmem:[%s1 + $0xc8] sm:$0xf]
  %v99 = vld [vmem:[%s1 + $0xcc] sm:$0xf]
  %v100 = vld [vmem:[%s1 + $0xd0] sm:$0xf]
  %v101 = vld [vmem:[%s1 + $0xd4] sm:$0xf]
  %v102 = vld [vmem:[%s1 + $0xd8] sm:$0xf]
  %v103 = vld [vmem:[%s1 + $0xdc] sm:$0xf]
  %v104 = vld [vmem:[%s1 + $0xe0] sm:$0xf]
  %v105 = vld [vmem:[%s1 + $0xe4] sm:$0xf]
  %v106 = vld [vmem:[%s1 + $0xe8] sm:$0xf]
  %v107 = vld [vmem:[%s1 + $0xec] sm:$0xf]
  %v108 = vld [vmem:[%s1 + $0xf0] sm:$0xf]
  %v109 = vld [vmem:[%s1 + $0xf4] sm:$0xf]
  %v110 = vld [vmem:[%s1 + $0xf8] sm:$0xf]
  %v111 = vld [vmem:[%s1 + $0xfc] sm:$0xf]
  %v112 = vld [vmem:[%s1 + $0x100] sm:$0xf]
  %v113 = vld [vmem:[%s1 + $0x104] sm:$0xf]
  %v114 = vld [vmem:[%s1 + $0x108] sm:$0xf]
  %v115 = vld [vmem:[%s1 + $0x10c] sm:$0xf]
  %v116 = vld [vmem:[%s1 + $0x110] sm:$0xf]
  %v117 = vld [vmem:[%s1 + $0x114] sm:$0xf]
  %v118 = vld [vmem:[%s1 + $0x118] sm:$0xf]
  %v119 = vld [vmem:[%s1 + $0x11c] sm:$0xf]
  %v120 = vld [vmem:[%s1 + $0x120] sm:$0xf]
  %v121 = vld [vmem:[%s1 + $0x124] sm:$0xf]
  %v122 = vld [vmem:[%s1 + $0x128] sm:$0xf]
  %v123 = vld [vmem:[%s1 + $0x12c] sm:$0xf]
  %v124 = vld [vmem:[%s1 + $0x130] sm:$0xf]
  %v125 = vld [vmem:[%s1 + $0x134] sm:$0xf]
  %v126 = vld [vmem:[%s1 + $0x138] sm:$0xf]
  %v127 = vld [vmem:[%s1 + $0x13c] sm:$0xf]
  %v128 = vld [vmem:[%s1 + $0x140] sm:$0xf]
  %v129 = vld [vmem:[%s1 + $0x144] sm:$0xf]
  %v130 = vld [vmem:[%s1 + $0x148] sm:$0xf]
  %v131 = vld [vmem:[%s1 + $0x14c] sm:$0xf]
  %v132 = vld [vmem:[%s1 + $0x150] sm:$0xf]
  %v133 = vld [vmem:[%s1 + $0x154] sm:$0xf]
  %v134 = vld [vmem:[%s1 + $0x158] sm:$0xf]
  %v135 = vld [vmem:[%s1 + $0x15c] sm:$0xf]
  %v136 = vld [vmem:[%s1 + $0x160] sm:$0xf]
  %v137 = vld [vmem:[%s1 + $0x164] sm:$0xf]
  %v138 = vld [vmem:[%s1 + $0x168] sm:$0xf]
  %v139 = vld [vmem:[%s1 + $0x16c] sm:$0xf]
  %v140 = vld [vmem:[%s1 + $0x170] sm:$0xf]
  %v141 = vld [vmem:[%s1 + $0x174] sm:$0xf]
  %v142 = vld [vmem:[%s1 + $0x178] sm:$0xf]
  %v143 = vld [vmem:[%s1 + $0x17c] sm:$0xf]
  %v144 = vld [vmem:[%s1 + $0x180] sm:$0xf]
  %v145 = vld [vmem:[%s1 + $0x184] sm:$0xf]
  %v146 = vld [vmem:[%s2] sm:$0x1]
  %v148 = vperm.slane %v146, 0
  %v248 = vunpack.c.l.b16 %v48
  %v249 = vunpack.c.l.b16 %v49
  %v250 = vunpack.c.l.b16 %v50
  %v251 = vunpack.c.l.b16 %v51
  %v252 = vunpack.c.l.b16 %v52
  %v253 = vunpack.c.l.b16 %v53
  %v254 = vunpack.c.l.b16 %v54
  %v255 = vunpack.c.l.b16 %v55
  %v256 = vunpack.c.l.b16 %v56
  %v257 = vunpack.c.l.b16 %v57
  %v258 = vunpack.c.l.b16 %v58
  %v259 = vunpack.c.l.b16 %v59
  %v260 = vunpack.c.l.b16 %v60
  %v261 = vunpack.c.l.b16 %v61
  %v262 = vunpack.c.l.b16 %v62
  %v263 = vunpack.c.l.b16 %v63
  %v264 = vunpack.c.l.b16 %v64
  %v265 = vunpack.c.l.b16 %v65
  %v266 = vunpack.c.l.b16 %v66
  %v267 = vunpack.c.l.b16 %v67
  %v268 = vunpack.c.l.b16 %v68
  %v269 = vunpack.c.l.b16 %v69
  %v270 = vunpack.c.l.b16 %v70
  %v271 = vunpack.c.l.b16 %v71
  %v272 = vunpack.c.l.b16 %v72
  %v273 = vunpack.c.l.b16 %v73
  %v274 = vunpack.c.l.b16 %v74
  %v275 = vunpack.c.l.b16 %v75
  %v276 = vunpack.c.l.b16 %v76
  %v277 = vunpack.c.l.b16 %v77
  %v278 = vunpack.c.l.b16 %v78
  %v279 = vunpack.c.l.b16 %v79
  %v280 = vunpack.c.l.b16 %v80
  %v281 = vunpack.c.l.b16 %v81
  %v282 = vunpack.c.l.b16 %v82
  %v283 = vunpack.c.l.b16 %v83
  %v284 = vunpack.c.l.b16 %v84
  %v285 = vunpack.c.l.b16 %v85
  %v286 = vunpack.c.l.b16 %v86
  %v287 = vunpack.c.l.b16 %v87
  %v288 = vunpack.c.l.b16 %v88
  %v289 = vunpack.c.l.b16 %v89
  %v290 = vunpack.c.l.b16 %v90
  %v291 = vunpack.c.l.b16 %v91
  %v292 = vunpack.c.l.b16 %v92
  %v293 = vunpack.c.l.b16 %v93
  %v294 = vunpack.c.l.b16 %v94
  %v295 = vunpack.c.l.b16 %v95
  %v296 = vunpack.c.l.b16 %v96
  %v297 = vunpack.c.l.b16 %v97
  %v298 = vunpack.c.l.b16 %v98
  %v299 = vunpack.c.l.b16 %v99
  %v300 = vunpack.c.l.b16 %v100
  %v301 = vunpack.c.l.b16 %v101
  %v302 = vunpack.c.l.b16 %v102
  %v303 = vunpack.c.l.b16 %v103
  %v304 = vunpack.c.l.b16 %v104
  %v305 = vunpack.c.l.b16 %v105
  %v306 = vunpack.c.l.b16 %v106
  %v307 = vunpack.c.l.b16 %v107
  %v308 = vunpack.c.l.b16 %v108
  %v309 = vunpack.c.l.b16 %v109
  %v310 = vunpack.c.l.b16 %v110
  %v311 = vunpack.c.l.b16 %v111
  %v312 = vunpack.c.l.b16 %v112
  %v313 = vunpack.c.l.b16 %v113
  %v314 = vunpack.c.l.b16 %v114
  %v315 = vunpack.c.l.b16 %v115
  %v316 = vunpack.c.l.b16 %v116
  %v317 = vunpack.c.l.b16 %v117
  %v318 = vunpack.c.l.b16 %v118
  %v319 = vunpack.c.l.b16 %v119
  %v320 = vunpack.c.l.b16 %v120
  %v321 = vunpack.c.l.b16 %v121
  %v322 = vunpack.c.l.b16 %v122
  %v323 = vunpack.c.l.b16 %v123
  %v324 = vunpack.c.l.b16 %v124
  %v325 = vunpack.c.l.b16 %v125
  %v326 = vunpack.c.l.b16 %v126
  %v327 = vunpack.c.l.b16 %v127
  %v328 = vunpack.c.l.b16 %v128
  %v329 = vunpack.c.l.b16 %v129
  %v330 = vunpack.c.l.b16 %v130
  %v331 = vunpack.c.l.b16 %v131
  %v332 = vunpack.c.l.b16 %v132
  %v333 = vunpack.c.l.b16 %v133
  %v334 = vunpack.c.l.b16 %v134
  %v335 = vunpack.c.l.b16 %v135
  %v336 = vunpack.c.l.b16 %v136
  %v337 = vunpack.c.l.b16 %v137
  %v338 = vunpack.c.l.b16 %v138
  %v339 = vunpack.c.l.b16 %v139
  %v340 = vunpack.c.l.b16 %v140
  %v341 = vunpack.c.l.b16 %v141
  %v342 = vunpack.c.l.b16 %v142
  %v343 = vunpack.c.l.b16 %v143
  %v344 = vunpack.c.l.b16 %v144
  %v345 = vunpack.c.l.b16 %v145
  %v346 = vpack.c.b16 %v249, %v248
  %v347 = vpack.c.b16 %v251, %v250
  %v348 = vpack.c.b16 %v253, %v252
  %v349 = vpack.c.b16 %v255, %v254
  %v350 = vpack.c.b16 %v257, %v256
  %v351 = vpack.c.b16 %v259, %v258
  %v352 = vpack.c.b16 %v261, %v260
  %v353 = vpack.c.b16 %v263, %v262
  %v354 = vpack.c.b16 %v265, %v264
  %v355 = vpack.c.b16 %v267, %v266
  %v356 = vpack.c.b16 %v269, %v268
  %v357 = vpack.c.b16 %v271, %v270
  %v358 = vpack.c.b16 %v273, %v272
  %v359 = vpack.c.b16 %v275, %v274
  %v360 = vpack.c.b16 %v277, %v276
  %v361 = vpack.c.b16 %v279, %v278
  %v362 = vpack.c.b16 %v281, %v280
  %v363 = vpack.c.b16 %v283, %v282
  %v364 = vpack.c.b16 %v285, %v284
  %v365 = vpack.c.b16 %v287, %v286
  %v366 = vpack.c.b16 %v289, %v288
  %v367 = vpack.c.b16 %v291, %v290
  %v368 = vpack.c.b16 %v293, %v292
  %v369 = vpack.c.b16 %v295, %v294
  %v370 = vpack.c.b16 %v297, %v296
  %v371 = vpack.c.b16 %v299, %v298
  %v372 = vpack.c.b16 %v301, %v300
  %v373 = vpack.c.b16 %v303, %v302
  %v374 = vpack.c.b16 %v305, %v304
  %v375 = vpack.c.b16 %v307, %v306
  %v376 = vpack.c.b16 %v309, %v308
  %v377 = vpack.c.b16 %v311, %v310
  %v378 = vpack.c.b16 %v313, %v312
  %v379 = vpack.c.b16 %v315, %v314
  %v380 = vpack.c.b16 %v317, %v316
  %v381 = vpack.c.b16 %v319, %v318
  %v382 = vpack.c.b16 %v321, %v320
  %v383 = vpack.c.b16 %v323, %v322
  %v384 = vpack.c.b16 %v325, %v324
  %v385 = vpack.c.b16 %v327, %v326
  %v386 = vpack.c.b16 %v329, %v328
  %v387 = vpack.c.b16 %v331, %v330
  %v388 = vpack.c.b16 %v333, %v332
  %v389 = vpack.c.b16 %v335, %v334
  %v390 = vpack.c.b16 %v337, %v336
  %v391 = vpack.c.b16 %v339, %v338
  %v392 = vpack.c.b16 %v341, %v340
  %v393 = vpack.c.b16 %v343, %v342
  %v394 = vpack.c.b16 %v345, %v344
  %vm444 = vcmask 130048
  %v446 = vsel %vm444, %v47, 0
  %448 = vmatpush.bf16.msra.mxu0 %v353
  %449 = vmatpush.bf16.msra.mxu0 %v352
  %450 = vmatpush.bf16.msra.mxu0 %v351
  %451 = vmatpush.bf16.msra.mxu0 %v350
  %452 = vmatpush.bf16.msra.mxu0 %v349
  %453 = vmatpush.bf16.msra.mxu0 %v348
  %454 = vmatpush.bf16.msra.mxu0 %v347
  %455 = vmatpush.bf16.msra.mxu0 %v346
  %456 = vmatmul.bf16.gmra.mxu0 %v41
  %v457 = vpop.f32.mrf.mxu0
  %v458 = vadd.f32 %v148, %v457
  %v459 = vpop.f32.mrf.mxu0
  %v460 = vadd.f32 %v148, %v459
  %461 = vdwg.mxu0
  %462 = vmatpush.bf16.msra.mxu0 %v361
  %463 = vmatpush.bf16.msra.mxu0 %v360
  %464 = vmatpush.bf16.msra.mxu0 %v359
  %465 = vmatpush.bf16.msra.mxu0 %v358
  %466 = vmatpush.bf16.msra.mxu0 %v357
  %467 = vmatpush.bf16.msra.mxu0 %v356
  %468 = vmatpush.bf16.msra.mxu0 %v355
  %469 = vmatpush.bf16.msra.mxu0 %v354
  %470 = vmatmul.bf16.gmra.mxu0 %v42
  %v471 = vpop.f32.mrf.mxu0
  %v472 = vadd.f32 %v458, %v471
  %v473 = vpop.f32.mrf.mxu0
  %v474 = vadd.f32 %v460, %v473
  %475 = vdwg.mxu0
  %476 = vmatpush.bf16.msra.mxu0 %v369
  %477 = vmatpush.bf16.msra.mxu0 %v368
  %478 = vmatpush.bf16.msra.mxu0 %v367
  %479 = vmatpush.bf16.msra.mxu0 %v366
  %480 = vmatpush.bf16.msra.mxu0 %v365
  %481 = vmatpush.bf16.msra.mxu0 %v364
  %482 = vmatpush.bf16.msra.mxu0 %v363
  %483 = vmatpush.bf16.msra.mxu0 %v362
  %484 = vmatmul.bf16.gmra.mxu0 %v43
  %v485 = vpop.f32.mrf.mxu0
  %v486 = vadd.f32 %v472, %v485
  %v487 = vpop.f32.mrf.mxu0
  %v488 = vadd.f32 %v474, %v487
  %489 = vdwg.mxu0
  %490 = vmatpush.bf16.msra.mxu0 %v377
  %491 = vmatpush.bf16.msra.mxu0 %v376
  %492 = vmatpush.bf16.msra.mxu0 %v375
  %493 = vmatpush.bf16.msra.mxu0 %v374
  %494 = vmatpush.bf16.msra.mxu0 %v373
  %495 = vmatpush.bf16.msra.mxu0 %v372
  %496 = vmatpush.bf16.msra.mxu0 %v371
  %497 = vmatpush.bf16.msra.mxu0 %v370
  %498 = vmatmul.bf16.gmra.mxu0 %v44
  %v499 = vpop.f32.mrf.mxu0
  %v500 = vadd.f32 %v486, %v499
  %v501 = vpop.f32.mrf.mxu0
  %v502 = vadd.f32 %v488, %v501
  %503 = vdwg.mxu0
  %504 = vmatpush.bf16.msra.mxu0 %v385
  %505 = vmatpush.bf16.msra.mxu0 %v384
  %506 = vmatpush.bf16.msra.mxu0 %v383
  %507 = vmatpush.bf16.msra.mxu0 %v382
  %508 = vmatpush.bf16.msra.mxu0 %v381
  %509 = vmatpush.bf16.msra.mxu0 %v380
  %510 = vmatpush.bf16.msra.mxu0 %v379
  %511 = vmatpush.bf16.msra.mxu0 %v378
  %512 = vmatmul.bf16.gmra.mxu0 %v45
  %v513 = vpop.f32.mrf.mxu0
  %v514 = vadd.f32 %v500, %v513
  %v515 = vpop.f32.mrf.mxu0
  %v516 = vadd.f32 %v502, %v515
  %517 = vdwg.mxu0
  %518 = vmatpush.bf16.msra.mxu0 %v393
  %519 = vmatpush.bf16.msra.mxu0 %v392
  %520 = vmatpush.bf16.msra.mxu0 %v391
  %521 = vmatpush.bf16.msra.mxu0 %v390
  %522 = vmatpush.bf16.msra.mxu0 %v389
  %523 = vmatpush.bf16.msra.mxu0 %v388
  %524 = vmatpush.bf16.msra.mxu0 %v387
  %525 = vmatpush.bf16.msra.mxu0 %v386
  %526 = vmatmul.bf16.gmra.mxu0 %v46
  %v527 = vpop.f32.mrf.mxu0
  %v528 = vadd.f32 %v514, %v527
  %v529 = vpop.f32.mrf.mxu0
  %v530 = vadd.f32 %v516, %v529
  %531 = vdwg.mxu0
  %532 = vmatpush.bf16.msra.mxu0 0
  %533 = vmatpush.bf16.msra.mxu0 0
  %534 = vmatpush.bf16.msra.mxu0 0
  %535 = vmatpush.bf16.msra.mxu0 0
  %536 = vmatpush.bf16.msra.mxu0 0
  %537 = vmatpush.bf16.msra.mxu0 0
  %538 = vmatpush.bf16.msra.mxu0 0
  %539 = vmatpush.bf16.msra.mxu0 %v394
  %540 = vmatmul.bf16.gmra.mxu0 %v446
  %v541 = vpop.f32.mrf.mxu0
  %v542 = vadd.f32 %v528, %v541
  %v543 = vpop.f32.mrf.mxu0
  %v544 = vadd.f32 %v530, %v543
  %545 = vdwg.mxu0
  %vm546 = vcmp.gt.f32.partialorder %v542, 0.0
  %vm547 = vcmp.gt.f32.partialorder %v544, 0.0
  %v548 = vmul.f32 %v542, 0.01
  %v549 = vmul.f32 %v544, 0.01
  %v550 = vsel %vm546, %v542, %v548
  %v551 = vsel %vm547, %v544, %v549
  %v552 = vpack.c.bf16 %v551, %v550
  %v553 = vld [vmem:[%s3] sm:$0xf]
  %v554 = vld [vmem:[%s3 + $0x4] sm:$0xf]
  %v555 = vld [vmem:[%s3 + $0x8] sm:$0xf]
  %v556 = vld [vmem:[%s3 + $0xc] sm:$0xf]
  %v557 = vld [vmem:[%s3 + $0x10] sm:$0xf]
  %v558 = vld [vmem:[%s3 + $0x14] sm:$0xf]
  %v559 = vld [vmem:[%s3 + $0x18] sm:$0xf]
  %v560 = vld [vmem:[%s3 + $0x1c] sm:$0xf]
  %v561 = vld [vmem:[%s3 + $0x20] sm:$0xf]
  %v562 = vld [vmem:[%s3 + $0x24] sm:$0xf]
  %v563 = vld [vmem:[%s3 + $0x28] sm:$0xf]
  %v564 = vld [vmem:[%s3 + $0x2c] sm:$0xf]
  %v565 = vld [vmem:[%s3 + $0x30] sm:$0xf]
  %v566 = vld [vmem:[%s3 + $0x34] sm:$0xf]
  %v567 = vld [vmem:[%s3 + $0x38] sm:$0xf]
  %v568 = vld [vmem:[%s3 + $0x3c] sm:$0xf]
  %v569 = vld [vmem:[%s4] sm:$0x1]
  %v571 = vperm.slane %v569, 0
  %v589 = vunpack.c.l.b16 %v553
  %v590 = vunpack.c.l.b16 %v554
  %v591 = vunpack.c.l.b16 %v555
  %v592 = vunpack.c.l.b16 %v556
  %v593 = vunpack.c.l.b16 %v557
  %v594 = vunpack.c.l.b16 %v558
  %v595 = vunpack.c.l.b16 %v559
  %v596 = vunpack.c.l.b16 %v560
  %v597 = vunpack.c.l.b16 %v561
  %v598 = vunpack.c.l.b16 %v562
  %v599 = vunpack.c.l.b16 %v563
  %v600 = vunpack.c.l.b16 %v564
  %v601 = vunpack.c.l.b16 %v565
  %v602 = vunpack.c.l.b16 %v566
  %v603 = vunpack.c.l.b16 %v567
  %v604 = vunpack.c.l.b16 %v568
  %v605 = vpack.c.b16 %v590, %v589
  %v606 = vpack.c.b16 %v592, %v591
  %v607 = vpack.c.b16 %v594, %v593
  %v608 = vpack.c.b16 %v596, %v595
  %v609 = vpack.c.b16 %v598, %v597
  %v610 = vpack.c.b16 %v600, %v599
  %v611 = vpack.c.b16 %v602, %v601
  %v612 = vpack.c.b16 %v604, %v603
  %621 = vmatpush.bf16.msra.mxu0 %v612
  %622 = vmatpush.bf16.msra.mxu0 %v611
  %623 = vmatpush.bf16.msra.mxu0 %v610
  %624 = vmatpush.bf16.msra.mxu0 %v609
  %625 = vmatpush.bf16.msra.mxu0 %v608
  %626 = vmatpush.bf16.msra.mxu0 %v607
  %627 = vmatpush.bf16.msra.mxu0 %v606
  %628 = vmatpush.bf16.msra.mxu0 %v605
  %629 = vmatmul.bf16.gmra.mxu0 %v552
  %v630 = vpop.f32.mrf.mxu0
  %v631 = vadd.f32 %v571, %v630
  %v632 = vpop.f32.mrf.mxu0
  %v633 = vadd.f32 %v571, %v632
  %634 = vdwg.mxu0
  %vm635 = vcmp.gt.f32.partialorder %v631, 0.0
  %vm636 = vcmp.gt.f32.partialorder %v633, 0.0
  %v637 = vmul.f32 %v631, 0.01
  %v638 = vmul.f32 %v633, 0.01
  %v639 = vsel %vm635, %v631, %v637
  %v640 = vsel %vm636, %v633, %v638
  %v641 = vpack.c.bf16 %v640, %v639
  %v642 = vld [vmem:[%s5] sm:$0xf]
  %v643 = vld [vmem:[%s5 + $0x4] sm:$0xf]
  %v644 = vld [vmem:[%s5 + $0x8] sm:$0xf]
  %v645 = vld [vmem:[%s5 + $0xc] sm:$0xf]
  %v646 = vld [vmem:[%s5 + $0x10] sm:$0xf]
  %v647 = vld [vmem:[%s5 + $0x14] sm:$0xf]
  %v648 = vld [vmem:[%s5 + $0x18] sm:$0xf]
  %v649 = vld [vmem:[%s5 + $0x1c] sm:$0xf]
  %v650 = vld [vmem:[%s6] sm:$0x1]
  %v652 = vperm.slane %v650, 0
  %v662 = vunpack.c.l.b16 %v642
  %v663 = vunpack.c.l.b16 %v643
  %v664 = vunpack.c.l.b16 %v644
  %v665 = vunpack.c.l.b16 %v645
  %v666 = vunpack.c.l.b16 %v646
  %v667 = vunpack.c.l.b16 %v647
  %v668 = vunpack.c.l.b16 %v648
  %v669 = vunpack.c.l.b16 %v649
  %v670 = vpack.c.b16 %v663, %v662
  %v671 = vpack.c.b16 %v665, %v664
  %v672 = vpack.c.b16 %v667, %v666
  %v673 = vpack.c.b16 %v669, %v668
  %vm678 = vcmask 523264
  %v680 = vsel %vm678, %v641, 0
  %682 = vmatpush.bf16.msra.mxu0 0
  %683 = vmatpush.bf16.msra.mxu0 0
  %684 = vmatpush.bf16.msra.mxu0 0
  %685 = vmatpush.bf16.msra.mxu0 0
  %686 = vmatpush.bf16.msra.mxu0 %v673
  %687 = vmatpush.bf16.msra.mxu0 %v672
  %688 = vmatpush.bf16.msra.mxu0 %v671
  %689 = vmatpush.bf16.msra.mxu0 %v670
  %690 = vmatmul.bf16.gmra.mxu0 %v680
  %v691 = vpop.f32.mrf.mxu0
  %v692 = vadd.f32 %v652, %v691
  %v693 = vpop.f32.mrf.mxu0
  %v694 = vadd.f32 %v652, %v693
  %695 = vdwg.mxu0
  %696 = vmax.xlane.f32.xlu0 %v692
  %v697 = vpop.xlane.xlu0 %696
  %698 = vmax.xlane.f32.xlu0 %v694
  %v699 = vpop.xlane.xlu0 %698
  %v700 = vsub.f32 %v692, %v697
  %v701 = vsub.f32 %v694, %v699
  %v702 = vmul.f32 %v700, 1.442695
  %v703 = vpow.pop %v702
  %v704 = vmul.f32 %v701, 1.442695
  %v705 = vpow.pop %v704
  %706 = vadd.xlane.f32.xlu0 %v703
  %v707 = vpop.xlane.xlu0 %706
  %708 = vadd.xlane.f32.xlu0 %v705
  %v709 = vpop.xlane.xlu0 %708
  %v710 = vlog2.pop %v707
  %v711 = vmul.f32 %v710, 0.6931472
  %v712 = vlog2.pop %v709
  %v713 = vmul.f32 %v712, 0.6931472
  %v714 = vsub.f32 %v700, %v711
  %v715 = vsub.f32 %v701, %v713
  %v716 = vpack.c.bf16 %v714, %v714
  %v717 = vpack.c.bf16 %v715, %v715
  %718 = vst [vmem:[%s7] sm:$0xf] %v716
  %719 = vst [vmem:[%s7 + $0x4] sm:$0xf] %v717
  // Predicated region
  $region30: #{mnist_nn_forward.1} parent=0 // pred_check
    _
  $region31: #{mnist_nn_forward.1} parent=0 // pred_check_branch
    %721 = sbr.rel (0) target = $region33
  $region32: #{mnist_nn_forward.1} parent=0 // pred_region
    _
  $region33: #{mnist_nn_forward.1} parent=0 // pred_fallthru
    _
  // Predicated region
  $region34: #{mnist_nn_forward.1} parent=0 // pred_check
    _
  $region35: #{mnist_nn_forward.1} parent=0 // pred_check_branch
    %723 = sbr.rel (0) target = $region37
  $region36: #{mnist_nn_forward.1} parent=0 // pred_region
    _
  $region37: #{mnist_nn_forward.1} parent=0 // pred_fallthru
    _

</llo_original>
